<compile_context>
chip_gen: v5e
topology: v5e:2x2
jax: 0.10.0
libtpu: 0.0.40
codegen_flags: <defaults>
</compile_context>

<pallas_src>
import functools
import math

import jax
import jax.numpy as jnp
from jax import lax
from jax.experimental import pallas as pl
from jax.experimental.pallas import tpu as pltpu

_MIB = 1024 * 1024


def _cdiv(a, b):
    return -(-a // b)


def _largest_divisor_leq(n, cap):
    cap = int(max(1, min(n, cap)))
    for d in range(cap, 0, -1):
        if n % d == 0:
            return d
    return 1


def _tpu_params(force_num_cores=None):
    """(physical VMEM bytes per core, TensorCores per chip), with safe fallbacks."""
    vmem_phys = 128 * _MIB
    num_cores = 1
    try:
        info = pltpu.get_tpu_info()
        vmem_phys = int(getattr(info, "vmem_capacity_bytes", vmem_phys) or vmem_phys)
        found = None
        for attr in ("num_cores", "core_count", "num_tensorcores", "cores_per_chip"):
            v = getattr(info, attr, None)
            if v:
                found = int(v)
                break
        if found is not None:
            num_cores = found
        else:
            # Heuristic: v7x has 64 MiB VMEM per TC and 2 TCs/chip; v5e/v6e 128 MiB, 1 TC.
            num_cores = 2 if vmem_phys <= 64 * _MIB else 1
    except Exception:
        pass
    if force_num_cores is not None:
        num_cores = int(force_num_cores)
    return vmem_phys, num_cores


def _avg_readout_kernel(seq_ref, out_ref, *, m_rows, tile_m, tiles_per_split,
                        need_mask):
    """Accumulate per-(split, batch-tile) partial node sums into the resident output."""
    s = pl.program_id(0)          # node-range split (feeds v7x's 2nd TC when B is small)
    m = pl.program_id(2)          # node (reduction) axis — innermost grid axis

    @pl.when(m == 0)
    def _():
        out_ref[...] = jnp.zeros_like(out_ref)

    x = seq_ref[...]              # (tile_b, tile_m, d_f), original dtype
    if need_mask:
        # Ragged tail: zero node rows beyond the true (folded) row count.  The
        # out-of-bounds tail of a partial block may hold garbage; the select
        # (not a multiply) guarantees it cannot contribute (even NaNs).
        t = s * tiles_per_split + m
        valid = m_rows - t * tile_m
        row_ids = lax.broadcasted_iota(jnp.int32, x.shape, 1)
        x = jnp.where(row_ids < valid, x, jnp.zeros_like(x))
    # Widen fused into the reduction (accumulate in f32, no separate full-tile cast).
    out_ref[...] += jnp.sum(x, axis=1, dtype=jnp.float32)[None]


def avg_readout(seq, *, target_block_bytes=None, vmem_limit_bytes=None,
                force_num_cores=None):
    """Mean over axis 1 of a (B, N, D) array (PyTorch AvgReadout.forward)."""
    B, N, D = seq.shape
    out_dtype = seq.dtype
    itemsize = jnp.dtype(seq.dtype).itemsize

    vmem_phys, num_cores = _tpu_params(force_num_cores)
    if target_block_bytes is None:
        if vmem_phys <= 64 * _MIB:                       # v7x-class
            target_block_bytes = max(_MIB, min(12 * _MIB, vmem_phys // 5))
        else:                                            # v5e / v6e
            target_block_bytes = 16 * _MIB
    if vmem_limit_bytes is None:
        vmem_limit_bytes = 48 * _MIB if vmem_phys <= 64 * _MIB else 96 * _MIB
    vmem_limit_bytes = int(min(vmem_limit_bytes, (7 * vmem_phys) // 8))

    # ---- Lane-dense folding: pack `fold` consecutive node rows into the lane
    # axis (free contiguous reshape) whenever fold*D is a multiple of 128 and N
    # is fold-aligned.  Mean semantics unchanged: sum everything, divide by N.
    f0 = 128 // math.gcd(D, 128)
    fold = f0 if (f0 > 1 and N % f0 == 0) else 1
    d_f = fold * D
    m_rows = N // fold
    seq_f = seq.reshape(B, m_rows, d_f) if fold > 1 else seq
    # TODO(synk): when N % fold != 0 we fall back to fold=1 (lane-masked loads for
    # D < 128) instead of padding; a separate in-kernel tail pass could keep folding.

    # ---- Node-tile size from the VMEM budget.  Budget by the f32 accumulation
    # footprint (not the raw dtype) so bf16/int8 widen temps never spill; align
    # to the dtype's sublane packing (f32:8, bf16:16, int8/fp8:32).
    sub_align = 8 * max(1, 4 // itemsize)
    budget_rows = max(1, target_block_bytes // (d_f * 4))
    if m_rows <= budget_rows:
        tile_m = m_rows                                  # whole (folded) node axis at once
    else:
        tile_m = max(sub_align, (budget_rows // sub_align) * sub_align)
    num_tiles = _cdiv(m_rows, tile_m)

    # ---- Batch tile fills the remaining budget.  Only force >= num_cores batch
    # tiles on multi-TensorCore chips (v7x); on v5e/v6e splitting the batch just
    # adds per-step overhead with no parallelism benefit.
    b_cap = max(1, budget_rows // tile_m)
    if num_cores > 1 and B >= num_cores:
        b_cap = min(b_cap, max(1, B // num_cores))
    tile_b = _largest_divisor_leq(B, b_cap)
    grid_b = B // tile_b

    # ---- If the batch axis alone can't feed every TensorCore (e.g. B == 1 on
    # v7x), add a leading parallel axis splitting the node range into per-core
    # partial sums, combined in the wrapper.
    if num_cores > 1 and grid_b < num_cores and num_tiles >= num_cores:
        num_splits = num_cores
    else:
        num_splits = 1
    tiles_per_split = _cdiv(num_tiles, num_splits)
    need_mask = (num_splits * tiles_per_split * tile_m) != m_rows

    def seq_index_map(s, b, m):
        t = jnp.minimum(s * tiles_per_split + m, num_tiles - 1)  # clamp padded tiles
        return (b, t, 0)

    def out_index_map(s, b, m):
        return (s * grid_b + b, 0, 0)

    kernel = functools.partial(
        _avg_readout_kernel, m_rows=m_rows, tile_m=tile_m,
        tiles_per_split=tiles_per_split, need_mask=need_mask)

    partial = pl.pallas_call(
        kernel,
        out_shape=jax.ShapeDtypeStruct((num_splits * grid_b, tile_b, d_f),
                                       jnp.float32),
        grid_spec=pltpu.PrefetchScalarGridSpec(
            num_scalar_prefetch=0,
            grid=(num_splits, grid_b, tiles_per_split),   # reduction axis last
            in_specs=[pl.BlockSpec((tile_b, tile_m, d_f), seq_index_map)],
            out_specs=pl.BlockSpec((1, tile_b, d_f), out_index_map),
        ),
        compiler_params=pltpu.CompilerParams(
            dimension_semantics=("parallel", "parallel", "arbitrary"),
            vmem_limit_bytes=vmem_limit_bytes,
        ),
    )(seq_f)

    # ---- Tiny wrapper epilogue on a (num_splits, B, d_f) array: combine node
    # splits, undo lane folding, divide by the true N, cast back.
    total = partial.reshape(num_splits, B, d_f)
    total = total[0] if num_splits == 1 else total.sum(axis=0)
    if fold > 1:
        total = total.reshape(B, fold, D).sum(axis=1)
    return (total * (1.0 / float(N))).astype(out_dtype)


if __name__ == "__main__":
    key = jax.random.PRNGKey(0)
    k1, k2, k3, k4, k5 = jax.random.split(key, 5)

    # 1) Module-scale shape (batch, nodes, features): whole reduction in one block.
    seq = jax.random.normal(k1, (2, 16, 32), dtype=jnp.float32)
    out = jax.block_until_ready(avg_readout(seq))
    assert out.shape == (2, 32)
    assert jnp.allclose(out, jnp.mean(seq, axis=1), atol=1e-5, rtol=1e-5)

    # 2) Misaligned N with a multi-tile reduction: tiny block budget forces
    #    grid_m > 1 and exercises the in-kernel ragged-row mask (no jnp.pad).
    seq2 = jax.random.normal(k2, (4, 100, 32), dtype=jnp.float32)
    out2 = jax.block_until_ready(avg_readout(seq2, target_block_bytes=8 * 1024))
    assert jnp.allclose(out2, jnp.mean(seq2, axis=1), atol=1e-5, rtol=1e-5)

    # 3) N not fold-aligned -> lane-fold fallback (fold=1).
    seq3 = jax.random.normal(k3, (2, 7, 32), dtype=jnp.float32)
    out3 = jax.block_until_ready(avg_readout(seq3))
    assert jnp.allclose(out3, jnp.mean(seq3, axis=1), atol=1e-5, rtol=1e-5)

    # 4) B == 1 with the node-range split across (emulated) 2 TensorCores.
    seq4 = jax.random.normal(k4, (1, 64, 32), dtype=jnp.float32)
    out4 = jax.block_until_ready(
        avg_readout(seq4, target_block_bytes=4 * 1024, force_num_cores=2))
    assert jnp.allclose(out4, jnp.mean(seq4, axis=1), atol=1e-5, rtol=1e-5)

    # 5) bf16 input: f32 accumulation + 16-row sublane alignment.
    seq5 = jax.random.normal(k5, (2, 64, 32), dtype=jnp.bfloat16)
    out5 = jax.block_until_ready(avg_readout(seq5))
    ref5 = jnp.mean(seq5.astype(jnp.float32), axis=1)
    assert jnp.allclose(out5.astype(jnp.float32), ref5, atol=2e-2, rtol=2e-2)

    print("KERNEL_OK")
</pallas_src>

<mosaic_0001>
module attributes {stable_mosaic.version = 11 : i64} {
  func.func @_avg_readout_kernel(%arg0: i32, %arg1: i32, %arg2: i32, %arg3: memref<2x4x128xf32, #tpu.memory_space<vmem>>, %arg4: memref<1x2x128xf32, #tpu.memory_space<vmem>>) attributes {dimension_semantics = [#tpu.dimension_semantics<parallel>, #tpu.dimension_semantics<parallel>, #tpu.dimension_semantics<arbitrary>], iteration_bounds = array<i64: 1, 1, 1>, scalar_prefetch = 0 : i64, scratch_operands = 0 : i64, tpu.core_type = #tpu.core_type<tc>, window_params = [{transform_indices = @transform_0, window_bounds = array<i64: 2, 4, 128>}, {transform_indices = @transform_1, window_bounds = array<i64: 1, 2, 128>}]} {
    %c0_i32 = arith.constant 0 : i32
    %0 = arith.cmpi eq, %arg2, %c0_i32 : i32
    %1 = arith.extui %0 : i1 to i32
    %c0_i32_0 = arith.constant 0 : i32
    %2 = arith.cmpi ne, %1, %c0_i32_0 : i32
    scf.if %2 {
      %cst_9 = arith.constant 0.000000e+00 : f32
      %9 = vector.broadcast %cst_9 : f32 to vector<1x2x128xf32>
      %c0_10 = arith.constant 0 : index
      %c0_11 = arith.constant 0 : index
      %c0_12 = arith.constant 0 : index
      %10 = vector.load %arg4[%c0_10, %c0_11, %c0_12] : memref<1x2x128xf32, #tpu.memory_space<vmem>>, vector<1x2x128xf32>
      tpu.vector_store %arg4[%c0_10, %c0_11, %c0_12], %9 {strides = array<i32>} : memref<1x2x128xf32, #tpu.memory_space<vmem>>, vector<1x2x128xf32>,
    } else {
    }
    %c0 = arith.constant 0 : index
    %c0_1 = arith.constant 0 : index
    %c0_2 = arith.constant 0 : index
    %3 = vector.load %arg3[%c0, %c0_1, %c0_2] : memref<2x4x128xf32, #tpu.memory_space<vmem>>, vector<2x4x128xf32>
    %c0_3 = arith.constant 0 : index
    %c0_4 = arith.constant 0 : index
    %c0_5 = arith.constant 0 : index
    %4 = vector.load %arg4[%c0_3, %c0_4, %c0_5] : memref<1x2x128xf32, #tpu.memory_space<vmem>>, vector<1x2x128xf32>
    %cst = arith.constant dense<0.000000e+00> : vector<2x128xf32>
    %5 = vector.multi_reduction <add>, %3, %cst [1] : vector<2x4x128xf32> to vector<2x128xf32>
    %6 = vector.shape_cast %5 : vector<2x128xf32> to vector<1x2x128xf32>
    %7 = arith.addf %4, %6 : vector<1x2x128xf32>
    %c0_6 = arith.constant 0 : index
    %c0_7 = arith.constant 0 : index
    %c0_8 = arith.constant 0 : index
    %8 = vector.load %arg4[%c0_6, %c0_7, %c0_8] : memref<1x2x128xf32, #tpu.memory_space<vmem>>, vector<1x2x128xf32>
    tpu.vector_store %arg4[%c0_6, %c0_7, %c0_8], %7 {strides = array<i32>} : memref<1x2x128xf32, #tpu.memory_space<vmem>>, vector<1x2x128xf32>,
    return
  }
  func.func @transform_0(%arg0: i32, %arg1: i32, %arg2: i32) -> (i32, i32, i32) {
    %c1_i32 = arith.constant 1 : i32
    %0 = arith.muli %arg0, %c1_i32 : i32
    %1 = arith.addi %0, %arg2 : i32
    %c0_i32 = arith.constant 0 : i32
    %2 = arith.minsi %1, %c0_i32 : i32
    %c0_i32_0 = arith.constant 0 : i32
    %c0_i32_1 = arith.constant 0 : i32
    return %arg1, %2, %c0_i32_0 : i32, i32, i32
  }
  func.func @transform_1(%arg0: i32, %arg1: i32, %arg2: i32) -> (i32, i32, i32) {
    %c1_i32 = arith.constant 1 : i32
    %0 = arith.muli %arg0, %c1_i32 : i32
    %1 = arith.addi %0, %arg1 : i32
    %c0_i32 = arith.constant 0 : i32
    %c0_i32_0 = arith.constant 0 : i32
    %c0_i32_1 = arith.constant 0 : i32
    return %1, %c0_i32, %c0_i32_0 : i32, i32, i32
  }
}

</mosaic_0001>

<llo_original>
// kernel: tpu_custom_call.1
$region0: #{tpu_custom_call.1}
  #allocation0 [shape = 'u32[]', space=smem, size = 0x4, offset = 0x4, fixed_abs, tag = 'smem constant byte address 0x4 - core index']
  #allocation1 [shape = 'u32[72,128]{1,0:T(1,128)}', space=vmem, size = 0x9000, scoped, tag = 'internal scratch']
  %s0 = inlined_call_operand.hbm [shape: f32[2,4,128], index: 0, kind: input, shape index: {}]
  %s1 = inlined_call_operand.hbm [shape: f32[1,2,128], index: 1, kind: output, shape index: {}]
  %s2 = sld [smem:[#allocation0]]
  $region22: #{tpu_custom_call.1} parent=0
    _
  %s4 = ssub.s32 1, %s2
  %s5 = scalar_select 0, %s4, %s2
  $region1: #{tpu_custom_call.1} parent=0
    #allocation2 [shape = 'u8[4096]{0}', space=vmem, size = 0x1000, scoped, tag = 'input window, operand 0, single buffered']
    #allocation3 [shape = 's32[1]{0}', space=sflag, size = 0x4, scoped, tag = 'scoped memory for tpu_custom_call.1']
    #allocation4 [shape = 's32[1]{0}', space=sflag, size = 0x4, scoped, tag = 'scoped memory for tpu_custom_call.1']
    #allocation5 [shape = 'u8[1024]{0}', space=vmem, size = 0x400, scoped, tag = 'output window, operand 0, single buffered']
    %6 = vsyncpa [#allocation3], 0
    %7 = vsyncpa [#allocation4], 0
    // Predicated region
    $region2: #{tpu_custom_call.1} parent=1 // pred_check
      _
    $region3: #{tpu_custom_call.1} parent=1 // pred_check_branch
      %9 = sbr.rel (0) target = $region5
    $region4: #{tpu_custom_call.1} parent=1 // pred_region
      %s10 = sadd.s32 0, 0
      %p11 = scmp.lt.s32.totalorder %s10, 0
      %s12 = scalar_select %p11, %s10, 0
      %14 = vsyncadd [#allocation3], 0
      %s15 = smul.addr %s12, 4
      %s16 = scalar_lea.hbm %s0, %s15
      %s17 = sshll.u32 %s16, 4
      %s18 = int_to_ptr.hbm [resolvable:$true] %s17
      %s19 = sshll.u32 [#allocation2], 4
      %s20 = int_to_ptr.vmem [resolvable:$true] %s19
      %25 = dma.hbm_to_vmem [thread:$0]  %s18, 128, %s20, [#allocation3], 64, 64, 4
    $region5: #{tpu_custom_call.1} parent=1 // pred_fallthru
      _
    // Predicated region
    $region6: #{tpu_custom_call.1} parent=1 // pred_check
      _
    $region7: #{tpu_custom_call.1} parent=1 // pred_check_branch
      %27 = sbr.rel (0) target = $region9
    $region8: #{tpu_custom_call.1} parent=1 // pred_region
      %29 = dma.done [#allocation3], 128
    $region9: #{tpu_custom_call.1} parent=1 // pred_fallthru
      _
    %s30 = sadd.s32 0, 0
    %p31 = scmp.lt.s32.totalorder %s30, 0
    %s32 = scalar_select %p31, %s30, 0
    %s33 = sadd.s32 0, 0
    %p34 = scmp.eq.s32.totalorder 0, 0
    // Predicated region
    $region10: #{tpu_custom_call.1} parent=1 // pred_check
      %p35 = pneg %p34
    $region11: #{tpu_custom_call.1} parent=1 // pred_check_branch
      %37 = sbr.rel (%p35) target = $region13
    $region12: #{tpu_custom_call.1} parent=1 // pred_region
      %38 = vst [vmem:[#allocation5] sm:$0x3] 0.0
    $region13: #{tpu_custom_call.1} parent=1 // pred_fallthru
      _
    %v39 = vld [vmem:[#allocation2] sm:$0xf]
    %v40 = vld [vmem:[#allocation2 + $0x4] sm:$0xf]
    %v41 = vld [vmem:[#allocation5] sm:$0x3]
    %vm42 = vcmask 1043456
    %v43 = vsel %vm42, %v39, 0.0
    %v44 = vrot.slane %v43, 4
    %v45 = vadd.f32 %v43, %v44
    %v46 = vrot.slane %v45, 2
    %v47 = vadd.f32 %v45, %v46
    %v48 = vrot.slane %v47, 1
    %v49 = vadd.f32 %v47, %v48
    %v50 = vsel %vm42, %v40, 0.0
    %v51 = vrot.slane %v50, 4
    %v52 = vadd.f32 %v50, %v51
    %v53 = vrot.slane %v52, 2
    %v54 = vadd.f32 %v52, %v53
    %v55 = vrot.slane %v54, 1
    %v56 = vadd.f32 %v54, %v55
    %vm59 = vcmask 1041409
    %v60 = vsel %vm59, %v56, %v49
    %v62 = vadd.f32 %v41, %v60
    %63 = vst [vmem:[#allocation5] sm:$0x3] %v62
    // Predicated region
    $region14: #{tpu_custom_call.1} parent=1 // pred_check
      _
    $region15: #{tpu_custom_call.1} parent=1 // pred_check_branch
      %65 = sbr.rel (0) target = $region17
    $region16: #{tpu_custom_call.1} parent=1 // pred_region
      %s66 = sadd.s32 0, 0
      %68 = vsyncadd [#allocation4], 0
      %s69 = smul.addr %s66, 2
      %s70 = scalar_lea.hbm %s1, %s69
      %s72 = sshll.u32 [#allocation5], 4
      %s73 = int_to_ptr.vmem [resolvable:$true] %s72
      %s74 = sshll.u32 %s70, 4
      %s75 = int_to_ptr.hbm [resolvable:$true] %s74
      %77 = dma.vmem_to_hbm [thread:$0]  %s73, 32, %s75, [#allocation4]
    $region17: #{tpu_custom_call.1} parent=1 // pred_fallthru
      _
    // Predicated region
    $region18: #{tpu_custom_call.1} parent=1 // pred_check
      _
    $region19: #{tpu_custom_call.1} parent=1 // pred_check_branch
      %79 = sbr.rel (0) target = $region21
    $region20: #{tpu_custom_call.1} parent=1 // pred_region
      %81 = dma.done [#allocation4], 32
    $region21: #{tpu_custom_call.1} parent=1 // pred_fallthru
      _
    %82 = vsyncpa [#allocation3], 1
    %83 = vsyncpa [#allocation4], 1

</llo_original>
